<compile_context>
chip_gen: v6e
topology: v6e:2x2x1
jax: 0.10.0
libtpu: 0.0.40
codegen_flags: <defaults>
</compile_context>

<pallas_src>
import functools

import jax
import jax.numpy as jnp
from jax import lax
from jax.experimental import pallas as pl
from jax.experimental.pallas import tpu as pltpu


# ---------------------------------------------------------------------------
# VMEM sizing: derive chunk size / vmem limit from the chip, not constants.
# ---------------------------------------------------------------------------

def _vmem_capacity_bytes():
    try:
        info = pltpu.get_tpu_info()
        return int(getattr(info, "vmem_capacity_bytes", 64 << 20))
    except Exception:
        return 64 << 20  # conservative default: v7x per-core VMEM


def _pick_channel_block(C, hw_block, dtype, per_buffer_budget):
    """Largest dtype-packed channel chunk keeping one (Ck, hw_block) buffer in budget."""
    itemsize = jnp.dtype(dtype).itemsize
    granule = max(8, 32 // itemsize)          # full sublane packing: 8 f32 / 16 bf16 / 32 i8
    if C * hw_block * itemsize <= per_buffer_budget:
        return C                               # single chunk (full-dim block is legal)
    ck = per_buffer_budget // (hw_block * itemsize)
    ck = max(granule, (ck // granule) * granule)
    ck = min(ck, ((C + granule - 1) // granule) * granule)
    return int(ck)


def _plan_reduce(C, hw_block, x_dtype, out_block_bytes, resident_bytes,
                 channel_block=None):
    """Pick (Ck, num_k, pipeline depth, vmem_limit) for the channel-reduce pass."""
    cap = _vmem_capacity_bytes()
    itemsize = jnp.dtype(x_dtype).itemsize

    # ~16 MiB per x buffer on 128 MiB parts (v5e/v6e), ~12.8 MiB on 64 MiB v7x.
    per_buffer_budget = min(16 << 20, cap // 5)
    if itemsize < 4:
        # The f32-accumulating sum keeps an f32 temp of the chunk alive; shrink
        # the native-dtype budget so the true peak still fits.
        per_buffer_budget = per_buffer_budget * (2 * itemsize) // (2 * itemsize + 4)

    if channel_block is None:
        ck = _pick_channel_block(C, hw_block, x_dtype, per_buffer_budget)
    else:
        ck = int(channel_block)
        assert ck == C or ck % 8 == 0, "channel_block must equal C or be a multiple of 8"
    num_k = (C + ck - 1) // ck

    chunk_bytes = ck * hw_block * itemsize
    nbuf = 2
    if hasattr(pl, "Buffered") and num_k >= 4 and chunk_bytes <= (2 << 20):
        nbuf = 3  # short per-chunk DMAs: a 3rd buffer keeps the DMA queue full

    est = (nbuf * chunk_bytes
           + (ck * hw_block * 4 if itemsize < 4 else 0)   # f32 sum-reduce temp
           + 2 * out_block_bytes                           # double-buffered out block
           + 2 * 8 * hw_block * 4                          # sum / max accumulators
           + resident_bytes + (1 << 20))                   # resident inputs + slack
    vmem_limit = int(min((3 * cap) // 4, max(32 << 20, est + (4 << 20))))
    return ck, num_k, nbuf, vmem_limit


def _x_block_spec(block_shape, index_map, nbuf):
    if nbuf != 2 and hasattr(pl, "Buffered"):
        return pl.BlockSpec(block_shape, index_map, pipeline_mode=pl.Buffered(nbuf))
    return pl.BlockSpec(block_shape, index_map)


# ---------------------------------------------------------------------------
# Kernel-side building blocks (shared by the fused and split paths).
# ---------------------------------------------------------------------------

def _partial_reduce(chunk, k, C, Ck, acc_rows):
    """(Ck, HWb) channel chunk -> (acc_rows, HWb) f32 partial sum and partial max."""
    hwb = chunk.shape[1]
    if C % Ck != 0:
        # Channel tail of the last grid step: Pallas pads the block past C with
        # unspecified data -- mask it (0 for sum, -inf for max).
        ch = k * Ck + lax.broadcasted_iota(jnp.int32, (Ck, hwb), 0)
        valid = ch < C
        x_sum = jnp.where(valid, chunk, jnp.zeros((), chunk.dtype))
        x_max = jnp.where(valid, chunk, jnp.array(-jnp.inf, chunk.dtype))
    else:
        x_sum = chunk
        x_max = chunk
    if acc_rows == 8:
        # Full-sublane-density partials: only VALU adds/maxes per chunk; max is
        # done in the native dtype, only the (8, HWb) partials are cast to f32.
        g = Ck // 8
        part_sum = jnp.sum(x_sum.reshape(g, 8, hwb).astype(jnp.float32), axis=0)
        part_max = jnp.max(x_max.reshape(g, 8, hwb), axis=0).astype(jnp.float32)
    else:  # Ck not a multiple of 8 (only when Ck == C < 8-aligned): direct reduce
        part_sum = jnp.sum(x_sum.astype(jnp.float32), axis=0, keepdims=True)
        part_max = jnp.max(x_max, axis=0, keepdims=True).astype(jnp.float32)
    return part_sum, part_max


def _accumulate(part_sum, part_max, sum_ref, max_ref, k):
    @pl.when(k == 0)
    def _first():  # direct write: no zero / -inf fill + RMW on the first step
        sum_ref[...] = part_sum
        max_ref[...] = part_max

    @pl.when(k > 0)
    def _rest():
        sum_ref[...] = sum_ref[...] + part_sum
        max_ref[...] = jnp.maximum(max_ref[...], part_max)


def _final_avg_max(sum_ref, max_ref, C):
    if sum_ref.shape[0] == 1:
        avg = sum_ref[...] * jnp.float32(1.0 / C)
        mx = max_ref[...]
    else:  # the single 8 -> 1 sublane (XLU) reduce, once per grid column
        avg = jnp.sum(sum_ref[...], axis=0, keepdims=True) * jnp.float32(1.0 / C)
        mx = jnp.max(max_ref[...], axis=0, keepdims=True)
    return avg, mx


def _conv3x3_sigmoid(avg, mx, w_ref, col, H, W):
    """3x3 zero-padded cross-correlation (2 in-ch -> 1 out-ch) + sigmoid, done on
    the flattened (1, H*W) maps with XLU rolls and hoisted boundary masks."""
    HW = H * W
    p = lax.broadcasted_iota(jnp.int32, (1, HW), 1)      # flat pixel index
    row_ok = {-1: p >= W, 0: None, 1: p < (H - 1) * W}
    col_ok = {-1: col >= 1, 0: None, 1: col <= W - 2}
    acc = jnp.zeros((1, HW), jnp.float32)
    for c, f in enumerate((avg, mx)):
        for kh in range(3):
            di = kh - 1
            for kw in range(3):
                dj = kw - 1
                d = di * W + dj
                # A (di, dj) shift on the (H, W) map is a roll by d on the flat
                # map; the wrapped pixels are exactly what the zero-padding mask
                # kills, so masking restores conv "padding=1".
                tap = f if d == 0 else pltpu.roll(f, (-d) % HW, axis=1)
                rm, cm = row_ok[di], col_ok[dj]
                m = rm if cm is None else (cm if rm is None else rm & cm)
                if m is not None:
                    tap = jnp.where(m, tap, 0.0)
                acc = acc + w_ref[c * 9 + kh * 3 + kw] * tap   # scalar tap from SMEM
    return jax.nn.sigmoid(acc)


# ---------------------------------------------------------------------------
# Kernels.
# ---------------------------------------------------------------------------

def _fused_kernel(w_ref, col_ref, x_ref, o_ref, sum_ref, max_ref, *, H, W, C):
    # w_ref: SMEM (18,) f32; col_ref: VMEM (1, HW) i32 (resident);
    # x_ref: VMEM (1, Ck, HW); o_ref: VMEM (1, 1, HW); scratch: (R, HW) f32 x2.
    Ck = x_ref.shape[1]
    k = pl.program_id(1)
    part_sum, part_max = _partial_reduce(x_ref[0], k, C, Ck, sum_ref.shape[0])
    _accumulate(part_sum, part_max, sum_ref, max_ref, k)

    @pl.when(k == pl.num_programs(1) - 1)
    def _finalize():
        avg, mx = _final_avg_max(sum_ref, max_ref, C)
        o_ref[0] = _conv3x3_sigmoid(avg, mx, w_ref, col_ref[...], H, W).astype(o_ref.dtype)


def _reduce_kernel(x_ref, cat_ref, sum_ref, max_ref, *, C):
    # Stage 1 of the split path: channel mean / max of one HW tile of one batch.
    Ck = x_ref.shape[1]
    k = pl.program_id(2)
    part_sum, part_max = _partial_reduce(x_ref[0], k, C, Ck, sum_ref.shape[0])
    _accumulate(part_sum, part_max, sum_ref, max_ref, k)

    @pl.when(k == pl.num_programs(2) - 1)
    def _finalize():
        avg, mx = _final_avg_max(sum_ref, max_ref, C)
        cat_ref[0, 0:1, :] = avg.astype(cat_ref.dtype)
        cat_ref[0, 1:2, :] = mx.astype(cat_ref.dtype)


def _conv_kernel(w_ref, col_ref, cat_ref, o_ref, *, H, W):
    # Stage 2 of the split path: tiny 3x3 conv + sigmoid over the (2, HW) cat map.
    avg = cat_ref[0, 0:1, :].astype(jnp.float32)
    mx = cat_ref[0, 1:2, :].astype(jnp.float32)
    o_ref[0] = _conv3x3_sigmoid(avg, mx, w_ref, col_ref[...], H, W).astype(o_ref.dtype)


# ---------------------------------------------------------------------------
# Wrappers.
# ---------------------------------------------------------------------------

def _spatial_attention_fused(x_flat, w_flat, col_ids, H, W, channel_block=None):
    B, C, HW = x_flat.shape
    itemsize = jnp.dtype(x_flat.dtype).itemsize
    ck, num_k, nbuf, vmem_limit = _plan_reduce(
        C, HW, x_flat.dtype,
        out_block_bytes=HW * itemsize,
        resident_bytes=HW * 4,                     # resident column-id map
        channel_block=channel_block)
    acc_rows = 8 if ck % 8 == 0 else 1

    kernel = functools.partial(_fused_kernel, H=H, W=W, C=C)
    return pl.pallas_call(
        kernel,
        out_shape=jax.ShapeDtypeStruct((B, 1, HW), x_flat.dtype),
        grid=(B, num_k),
        in_specs=[
            pl.BlockSpec(memory_space=pltpu.MemorySpace.SMEM),   # 18 conv taps (scalars)
            pl.BlockSpec((1, HW), lambda b, k: (0, 0)),          # column ids (resident)
            _x_block_spec((1, ck, HW), lambda b, k: (b, k, 0), nbuf),
        ],
        out_specs=pl.BlockSpec((1, 1, HW), lambda b, k: (b, 0, 0)),
        scratch_shapes=[pltpu.VMEM((acc_rows, HW), jnp.float32),   # running channel sum
                        pltpu.VMEM((acc_rows, HW), jnp.float32)],  # running channel max
        compiler_params=pltpu.CompilerParams(
            dimension_semantics=("parallel", "arbitrary"),
            vmem_limit_bytes=vmem_limit),
    )(w_flat, col_ids, x_flat)


def _spatial_attention_split(x_flat, w_flat, col_ids, H, W, n_hw, channel_block=None):
    B, C, HW = x_flat.shape
    hwb = HW // n_hw
    itemsize = jnp.dtype(x_flat.dtype).itemsize
    cap = _vmem_capacity_bytes()

    ck, num_k, nbuf, vmem_limit = _plan_reduce(
        C, hwb, x_flat.dtype,
        out_block_bytes=2 * hwb * 4,
        resident_bytes=0,
        channel_block=channel_block)
    acc_rows = 8 if ck % 8 == 0 else 1

    # Stage 1: channel mean / max, HW-tiled so the parallel axes have >= 2 blocks
    # even for B == 1 (keeps both v7x TensorCores' DMA engines busy).
    cat = pl.pallas_call(
        functools.partial(_reduce_kernel, C=C),
        out_shape=jax.ShapeDtypeStruct((B, 2, HW), jnp.float32),
        grid=(B, n_hw, num_k),
        in_specs=[_x_block_spec((1, ck, hwb), lambda b, h, k: (b, k, h), nbuf)],
        out_specs=pl.BlockSpec((1, 2, hwb), lambda b, h, k: (b, 0, h)),
        scratch_shapes=[pltpu.VMEM((acc_rows, hwb), jnp.float32),
                        pltpu.VMEM((acc_rows, hwb), jnp.float32)],
        compiler_params=pltpu.CompilerParams(
            dimension_semantics=("parallel", "parallel", "arbitrary"),
            vmem_limit_bytes=vmem_limit),
    )(x_flat)

    # Stage 2: the (negligible) 3x3 conv + sigmoid over the full-row cat map.
    est2 = 2 * (2 * HW * 4) + 2 * (HW * itemsize) + HW * 4 + (2 << 20)
    vmem2 = int(min((3 * cap) // 4, max(32 << 20, est2)))
    return pl.pallas_call(
        functools.partial(_conv_kernel, H=H, W=W),
        out_shape=jax.ShapeDtypeStruct((B, 1, HW), x_flat.dtype),
        grid=(B,),
        in_specs=[
            pl.BlockSpec(memory_space=pltpu.MemorySpace.SMEM),
            pl.BlockSpec((1, HW), lambda b: (0, 0)),
            pl.BlockSpec((1, 2, HW), lambda b: (b, 0, 0)),
        ],
        out_specs=pl.BlockSpec((1, 1, HW), lambda b: (b, 0, 0)),
        compiler_params=pltpu.CompilerParams(
            dimension_semantics=("parallel",),
            vmem_limit_bytes=vmem2),
    )(w_flat, col_ids, cat)


def spatial_attention(x, conv_weight, *, channel_block=None):
    """x: (B, C, H, W); conv_weight: (1, 2, 3, 3) OIHW.  Returns (B, 1, H, W)."""
    B, C, H, W = x.shape
    HW = H * W

    x_flat = x.reshape(B, C, HW)                          # lane-dense trailing dim
    w_flat = conv_weight.reshape(-1).astype(jnp.float32)  # (18,) scalar taps
    # Column ids for the conv boundary masks (kept as a tiny resident input so
    # the kernel avoids an in-kernel integer div/mod).
    col_ids = jnp.tile(jnp.arange(W, dtype=jnp.int32), H).reshape(1, HW)

    # v7x has 2 TensorCores: when the batch axis alone cannot fill them, split
    # the reduction over >= 2 lane-aligned HW tiles + a tiny second conv pass.
    if B == 1 and HW % 256 == 0:
        out_flat = _spatial_attention_split(x_flat, w_flat, col_ids, H, W, 2,
                                            channel_block=channel_block)
    else:
        out_flat = _spatial_attention_fused(x_flat, w_flat, col_ids, H, W,
                                            channel_block=channel_block)
    return out_flat.reshape(B, 1, H, W)


def spatial_attention_ref(x, conv_weight):
    """Pure-JAX reference (mirrors the PyTorch forward)."""
    avg = jnp.mean(x, axis=1, keepdims=True)
    mx = jnp.max(x, axis=1, keepdims=True)
    cat = jnp.concatenate([avg, mx], axis=1)
    y = lax.conv_general_dilated(
        cat, conv_weight, window_strides=(1, 1), padding=((1, 1), (1, 1)),
        dimension_numbers=("NCHW", "OIHW", "NCHW"))
    return jax.nn.sigmoid(y)


if __name__ == "__main__":
    key = jax.random.PRNGKey(0)
    kw, kx1, kx2, kx3 = jax.random.split(key, 4)

    # nn.Conv2d(2, 1, 3, bias=False) weight -> (1, 2, 3, 3), deterministic init.
    conv_weight = jax.random.normal(kw, (1, 2, 3, 3), dtype=jnp.float32) * 0.2

    # Case 1: fused path, batch-parallel, whole C in one chunk.
    x1 = jax.random.normal(kx1, (2, 4, 16, 16), dtype=jnp.float32)
    o1 = jax.block_until_ready(spatial_attention(x1, conv_weight))
    r1 = spatial_attention_ref(x1, conv_weight)
    assert o1.shape == (2, 1, 16, 16), o1.shape
    assert jnp.allclose(o1, r1, atol=1e-5, rtol=1e-5), float(jnp.max(jnp.abs(o1 - r1)))

    # Case 2: multi-chunk channel reduction with a masked tail (C=20, Ck=8).
    x2 = jax.random.normal(kx2, (2, 20, 16, 16), dtype=jnp.float32)
    o2 = jax.block_until_ready(spatial_attention(x2, conv_weight, channel_block=8))
    r2 = spatial_attention_ref(x2, conv_weight)
    assert jnp.allclose(o2, r2, atol=1e-5, rtol=1e-5), float(jnp.max(jnp.abs(o2 - r2)))

    # Case 3: B == 1 -> split path (HW-parallel reduce + tiny conv pass) so both
    # TensorCores stay busy on v7x.
    x3 = jax.random.normal(kx3, (1, 8, 16, 16), dtype=jnp.float32)
    o3 = jax.block_until_ready(spatial_attention(x3, conv_weight))
    r3 = spatial_attention_ref(x3, conv_weight)
    assert jnp.allclose(o3, r3, atol=1e-5, rtol=1e-5), float(jnp.max(jnp.abs(o3 - r3)))

    print("KERNEL_OK")
</pallas_src>

<mosaic_0001>
module attributes {stable_mosaic.version = 11 : i64} {
  func.func @_fused_kernel(%arg0: i32, %arg1: i32, %arg2: memref<18xf32, #tpu.memory_space<smem>>, %arg3: memref<1x256xi32, #tpu.memory_space<vmem>>, %arg4: memref<1x4x256xf32, #tpu.memory_space<vmem>>, %arg5: memref<1x1x256xf32, #tpu.memory_space<vmem>>, %arg6: memref<1x256xf32, #tpu.memory_space<vmem>>, %arg7: memref<1x256xf32, #tpu.memory_space<vmem>>) attributes {dimension_semantics = [#tpu.dimension_semantics<parallel>, #tpu.dimension_semantics<arbitrary>], iteration_bounds = array<i64: 2, 1>, scalar_prefetch = 0 : i64, scratch_operands = 2 : i64, tpu.core_type = #tpu.core_type<tc>, window_params = [{transform_indices = @transform_0, window_bounds = array<i64: 18>}, {pipeline_mode = #tpu.pipeline_mode<synchronous>, transform_indices = @transform_1, window_bounds = array<i64: 1, 256>}, {transform_indices = @transform_2, window_bounds = array<i64: 1, 4, 256>}, {transform_indices = @transform_3, window_bounds = array<i64: 1, 1, 256>}]} {
    %c0 = arith.constant 0 : index
    %c0_0 = arith.constant 0 : index
    %c0_1 = arith.constant 0 : index
    %0 = vector.load %arg4[%c0, %c0_0, %c0_1] : memref<1x4x256xf32, #tpu.memory_space<vmem>>, vector<1x4x256xf32>
    %1 = vector.shape_cast %0 : vector<1x4x256xf32> to vector<4x256xf32>
    %cst = arith.constant dense<0.000000e+00> : vector<256xf32>
    %2 = vector.multi_reduction <add>, %1, %cst [0] : vector<4x256xf32> to vector<256xf32>
    %3 = vector.shape_cast %2 : vector<256xf32> to vector<1x256xf32>
    %cst_2 = arith.constant dense<0xFF800000> : vector<256xf32>
    %4 = vector.multi_reduction <maximumf>, %1, %cst_2 [0] : vector<4x256xf32> to vector<256xf32>
    %5 = vector.shape_cast %4 : vector<256xf32> to vector<1x256xf32>
    %c0_i32 = arith.constant 0 : i32
    %6 = arith.cmpi eq, %arg1, %c0_i32 : i32
    %7 = arith.extui %6 : i1 to i32
    %c0_i32_3 = arith.constant 0 : i32
    %8 = arith.cmpi ne, %7, %c0_i32_3 : i32
    scf.if %8 {
      %c0_8 = arith.constant 0 : index
      %c0_9 = arith.constant 0 : index
      %15 = vector.load %arg6[%c0_8, %c0_9] : memref<1x256xf32, #tpu.memory_space<vmem>>, vector<1x256xf32>
      tpu.vector_store %arg6[%c0_8, %c0_9], %3 {strides = array<i32>} : memref<1x256xf32, #tpu.memory_space<vmem>>, vector<1x256xf32>,
      %c0_10 = arith.constant 0 : index
      %c0_11 = arith.constant 0 : index
      %16 = vector.load %arg7[%c0_10, %c0_11] : memref<1x256xf32, #tpu.memory_space<vmem>>, vector<1x256xf32>
      tpu.vector_store %arg7[%c0_10, %c0_11], %5 {strides = array<i32>} : memref<1x256xf32, #tpu.memory_space<vmem>>, vector<1x256xf32>,
    } else {
    }
    %c0_i32_4 = arith.constant 0 : i32
    %9 = arith.cmpi sgt, %arg1, %c0_i32_4 : i32
    %10 = arith.extui %9 : i1 to i32
    %c0_i32_5 = arith.constant 0 : i32
    %11 = arith.cmpi ne, %10, %c0_i32_5 : i32
    scf.if %11 {
      %c0_8 = arith.constant 0 : index
      %c0_9 = arith.constant 0 : index
      %15 = vector.load %arg6[%c0_8, %c0_9] : memref<1x256xf32, #tpu.memory_space<vmem>>, vector<1x256xf32>
      %16 = arith.addf %15, %3 : vector<1x256xf32>
      %c0_10 = arith.constant 0 : index
      %c0_11 = arith.constant 0 : index
      %17 = vector.load %arg6[%c0_10, %c0_11] : memref<1x256xf32, #tpu.memory_space<vmem>>, vector<1x256xf32>
      tpu.vector_store %arg6[%c0_10, %c0_11], %16 {strides = array<i32>} : memref<1x256xf32, #tpu.memory_space<vmem>>, vector<1x256xf32>,
      %c0_12 = arith.constant 0 : index
      %c0_13 = arith.constant 0 : index
      %18 = vector.load %arg7[%c0_12, %c0_13] : memref<1x256xf32, #tpu.memory_space<vmem>>, vector<1x256xf32>
      %19 = arith.maximumf %18, %5 : vector<1x256xf32>
      %c0_14 = arith.constant 0 : index
      %c0_15 = arith.constant 0 : index
      %20 = vector.load %arg7[%c0_14, %c0_15] : memref<1x256xf32, #tpu.memory_space<vmem>>, vector<1x256xf32>
      tpu.vector_store %arg7[%c0_14, %c0_15], %19 {strides = array<i32>} : memref<1x256xf32, #tpu.memory_space<vmem>>, vector<1x256xf32>,
    } else {
    }
    %c0_i32_6 = arith.constant 0 : i32
    %12 = arith.cmpi eq, %arg1, %c0_i32_6 : i32
    %13 = arith.extui %12 : i1 to i32
    %c0_i32_7 = arith.constant 0 : i32
    %14 = arith.cmpi ne, %13, %c0_i32_7 : i32
    scf.if %14 {
      %c0_8 = arith.constant 0 : index
      %c0_9 = arith.constant 0 : index
      %15 = vector.load %arg6[%c0_8, %c0_9] : memref<1x256xf32, #tpu.memory_space<vmem>>, vector<1x256xf32>
      %cst_10 = arith.constant 2.500000e-01 : f32
      %16 = vector.broadcast %cst_10 : f32 to vector<1x256xf32>
      %17 = arith.mulf %15, %16 : vector<1x256xf32>
      %c0_11 = arith.constant 0 : index
      %c0_12 = arith.constant 0 : index
      %18 = vector.load %arg7[%c0_11, %c0_12] : memref<1x256xf32, #tpu.memory_space<vmem>>, vector<1x256xf32>
      %c0_13 = arith.constant 0 : index
      %c0_14 = arith.constant 0 : index
      %19 = vector.load %arg3[%c0_13, %c0_14] : memref<1x256xi32, #tpu.memory_space<vmem>>, vector<1x256xi32>
      %20 = tpu.iota {dimensions = array<i32: 1>} : vector<1x256xi32>
      %c16_i32 = arith.constant 16 : i32
      %21 = vector.broadcast %c16_i32 : i32 to vector<1x256xi32>
      %22 = arith.cmpi sge, %20, %21 : vector<1x256xi32>
      %c240_i32 = arith.constant 240 : i32
      %23 = vector.broadcast %c240_i32 : i32 to vector<1x256xi32>
      %24 = arith.cmpi slt, %20, %23 : vector<1x256xi32>
      %c1_i32 = arith.constant 1 : i32
      %25 = vector.broadcast %c1_i32 : i32 to vector<1x256xi32>
      %26 = arith.cmpi sge, %19, %25 : vector<1x256xi32>
      %c14_i32 = arith.constant 14 : i32
      %27 = vector.broadcast %c14_i32 : i32 to vector<1x256xi32>
      %28 = arith.cmpi sle, %19, %27 : vector<1x256xi32>
      %cst_15 = arith.constant 0.000000e+00 : f32
      %29 = vector.broadcast %cst_15 : f32 to vector<1x256xf32>
      %c17_i32 = arith.constant 17 : i32
      %30 = tpu.dynamic_rotate %17 by %c17_i32 dim 1 : vector<1x256xf32>, i32 -> vector<1x256xf32>
      %31 = arith.andi %22, %26 : vector<1x256xi1>
      %cst_16 = arith.constant 0.000000e+00 : f32
      %32 = vector.broadcast %cst_16 : f32 to vector<1x256xf32>
      %33 = arith.select %31, %30, %32 : vector<1x256xi1>, vector<1x256xf32>
      %c0_17 = arith.constant 0 : index
      %34 = memref.load %arg2[%c0_17] : memref<18xf32, #tpu.memory_space<smem>>
      %35 = vector.broadcast %34 : f32 to vector<1x256xf32>
      %36 = arith.mulf %35, %33 : vector<1x256xf32>
      %37 = arith.addf %29, %36 : vector<1x256xf32>
      %c16_i32_18 = arith.constant 16 : i32
      %38 = tpu.dynamic_rotate %17 by %c16_i32_18 dim 1 : vector<1x256xf32>, i32 -> vector<1x256xf32>
      %cst_19 = arith.constant 0.000000e+00 : f32
      %39 = vector.broadcast %cst_19 : f32 to vector<1x256xf32>
      %40 = arith.select %22, %38, %39 : vector<1x256xi1>, vector<1x256xf32>
      %c1 = arith.constant 1 : index
      %41 = memref.load %arg2[%c1] : memref<18xf32, #tpu.memory_space<smem>>
      %42 = vector.broadcast %41 : f32 to vector<1x256xf32>
      %43 = arith.mulf %42, %40 : vector<1x256xf32>
      %44 = arith.addf %37, %43 : vector<1x256xf32>
      %c15_i32 = arith.constant 15 : i32
      %45 = tpu.dynamic_rotate %17 by %c15_i32 dim 1 : vector<1x256xf32>, i32 -> vector<1x256xf32>
      %46 = arith.andi %22, %28 : vector<1x256xi1>
      %cst_20 = arith.constant 0.000000e+00 : f32
      %47 = vector.broadcast %cst_20 : f32 to vector<1x256xf32>
      %48 = arith.select %46, %45, %47 : vector<1x256xi1>, vector<1x256xf32>
      %c2 = arith.constant 2 : index
      %49 = memref.load %arg2[%c2] : memref<18xf32, #tpu.memory_space<smem>>
      %50 = vector.broadcast %49 : f32 to vector<1x256xf32>
      %51 = arith.mulf %50, %48 : vector<1x256xf32>
      %52 = arith.addf %44, %51 : vector<1x256xf32>
      %c1_i32_21 = arith.constant 1 : i32
      %53 = tpu.dynamic_rotate %17 by %c1_i32_21 dim 1 : vector<1x256xf32>, i32 -> vector<1x256xf32>
      %cst_22 = arith.constant 0.000000e+00 : f32
      %54 = vector.broadcast %cst_22 : f32 to vector<1x256xf32>
      %55 = arith.select %26, %53, %54 : vector<1x256xi1>, vector<1x256xf32>
      %c3 = arith.constant 3 : index
      %56 = memref.load %arg2[%c3] : memref<18xf32, #tpu.memory_space<smem>>
      %57 = vector.broadcast %56 : f32 to vector<1x256xf32>
      %58 = arith.mulf %57, %55 : vector<1x256xf32>
      %59 = arith.addf %52, %58 : vector<1x256xf32>
      %c4 = arith.constant 4 : index
      %60 = memref.load %arg2[%c4] : memref<18xf32, #tpu.memory_space<smem>>
      %61 = vector.broadcast %60 : f32 to vector<1x256xf32>
      %62 = arith.mulf %61, %17 : vector<1x256xf32>
      %63 = arith.addf %59, %62 : vector<1x256xf32>
      %c255_i32 = arith.constant 255 : i32
      %64 = tpu.dynamic_rotate %17 by %c255_i32 dim 1 : vector<1x256xf32>, i32 -> vector<1x256xf32>
      %cst_23 = arith.constant 0.000000e+00 : f32
      %65 = vector.broadcast %cst_23 : f32 to vector<1x256xf32>
      %66 = arith.select %28, %64, %65 : vector<1x256xi1>, vector<1x256xf32>
      %c5 = arith.constant 5 : index
      %67 = memref.load %arg2[%c5] : memref<18xf32, #tpu.memory_space<smem>>
      %68 = vector.broadcast %67 : f32 to vector<1x256xf32>
      %69 = arith.mulf %68, %66 : vector<1x256xf32>
      %70 = arith.addf %63, %69 : vector<1x256xf32>
      %c241_i32 = arith.constant 241 : i32
      %71 = tpu.dynamic_rotate %17 by %c241_i32 dim 1 : vector<1x256xf32>, i32 -> vector<1x256xf32>
      %72 = arith.andi %24, %26 : vector<1x256xi1>
      %cst_24 = arith.constant 0.000000e+00 : f32
      %73 = vector.broadcast %cst_24 : f32 to vector<1x256xf32>
      %74 = arith.select %72, %71, %73 : vector<1x256xi1>, vector<1x256xf32>
      %c6 = arith.constant 6 : index
      %75 = memref.load %arg2[%c6] : memref<18xf32, #tpu.memory_space<smem>>
      %76 = vector.broadcast %75 : f32 to vector<1x256xf32>
      %77 = arith.mulf %76, %74 : vector<1x256xf32>
      %78 = arith.addf %70, %77 : vector<1x256xf32>
      %c240_i32_25 = arith.constant 240 : i32
      %79 = tpu.dynamic_rotate %17 by %c240_i32_25 dim 1 : vector<1x256xf32>, i32 -> vector<1x256xf32>
      %cst_26 = arith.constant 0.000000e+00 : f32
      %80 = vector.broadcast %cst_26 : f32 to vector<1x256xf32>
      %81 = arith.select %24, %79, %80 : vector<1x256xi1>, vector<1x256xf32>
      %c7 = arith.constant 7 : index
      %82 = memref.load %arg2[%c7] : memref<18xf32, #tpu.memory_space<smem>>
      %83 = vector.broadcast %82 : f32 to vector<1x256xf32>
      %84 = arith.mulf %83, %81 : vector<1x256xf32>
      %85 = arith.addf %78, %84 : vector<1x256xf32>
      %c239_i32 = arith.constant 239 : i32
      %86 = tpu.dynamic_rotate %17 by %c239_i32 dim 1 : vector<1x256xf32>, i32 -> vector<1x256xf32>
      %87 = arith.andi %24, %28 : vector<1x256xi1>
      %cst_27 = arith.constant 0.000000e+00 : f32
      %88 = vector.broadcast %cst_27 : f32 to vector<1x256xf32>
      %89 = arith.select %87, %86, %88 : vector<1x256xi1>, vector<1x256xf32>
      %c8 = arith.constant 8 : index
      %90 = memref.load %arg2[%c8] : memref<18xf32, #tpu.memory_space<smem>>
      %91 = vector.broadcast %90 : f32 to vector<1x256xf32>
      %92 = arith.mulf %91, %89 : vector<1x256xf32>
      %93 = arith.addf %85, %92 : vector<1x256xf32>
      %c17_i32_28 = arith.constant 17 : i32
      %94 = tpu.dynamic_rotate %18 by %c17_i32_28 dim 1 : vector<1x256xf32>, i32 -> vector<1x256xf32>
      %95 = arith.andi %22, %26 : vector<1x256xi1>
      %cst_29 = arith.constant 0.000000e+00 : f32
      %96 = vector.broadcast %cst_29 : f32 to vector<1x256xf32>
      %97 = arith.select %95, %94, %96 : vector<1x256xi1>, vector<1x256xf32>
      %c9 = arith.constant 9 : index
      %98 = memref.load %arg2[%c9] : memref<18xf32, #tpu.memory_space<smem>>
      %99 = vector.broadcast %98 : f32 to vector<1x256xf32>
      %100 = arith.mulf %99, %97 : vector<1x256xf32>
      %101 = arith.addf %93, %100 : vector<1x256xf32>
      %c16_i32_30 = arith.constant 16 : i32
      %102 = tpu.dynamic_rotate %18 by %c16_i32_30 dim 1 : vector<1x256xf32>, i32 -> vector<1x256xf32>
      %cst_31 = arith.constant 0.000000e+00 : f32
      %103 = vector.broadcast %cst_31 : f32 to vector<1x256xf32>
      %104 = arith.select %22, %102, %103 : vector<1x256xi1>, vector<1x256xf32>
      %c10 = arith.constant 10 : index
      %105 = memref.load %arg2[%c10] : memref<18xf32, #tpu.memory_space<smem>>
      %106 = vector.broadcast %105 : f32 to vector<1x256xf32>
      %107 = arith.mulf %106, %104 : vector<1x256xf32>
      %108 = arith.addf %101, %107 : vector<1x256xf32>
      %c15_i32_32 = arith.constant 15 : i32
      %109 = tpu.dynamic_rotate %18 by %c15_i32_32 dim 1 : vector<1x256xf32>, i32 -> vector<1x256xf32>
      %110 = arith.andi %22, %28 : vector<1x256xi1>
      %cst_33 = arith.constant 0.000000e+00 : f32
      %111 = vector.broadcast %cst_33 : f32 to vector<1x256xf32>
      %112 = arith.select %110, %109, %111 : vector<1x256xi1>, vector<1x256xf32>
      %c11 = arith.constant 11 : index
      %113 = memref.load %arg2[%c11] : memref<18xf32, #tpu.memory_space<smem>>
      %114 = vector.broadcast %113 : f32 to vector<1x256xf32>
      %115 = arith.mulf %114, %112 : vector<1x256xf32>
      %116 = arith.addf %108, %115 : vector<1x256xf32>
      %c1_i32_34 = arith.constant 1 : i32
      %117 = tpu.dynamic_rotate %18 by %c1_i32_34 dim 1 : vector<1x256xf32>, i32 -> vector<1x256xf32>
      %cst_35 = arith.constant 0.000000e+00 : f32
      %118 = vector.broadcast %cst_35 : f32 to vector<1x256xf32>
      %119 = arith.select %26, %117, %118 : vector<1x256xi1>, vector<1x256xf32>
      %c12 = arith.constant 12 : index
      %120 = memref.load %arg2[%c12] : memref<18xf32, #tpu.memory_space<smem>>
      %121 = vector.broadcast %120 : f32 to vector<1x256xf32>
      %122 = arith.mulf %121, %119 : vector<1x256xf32>
      %123 = arith.addf %116, %122 : vector<1x256xf32>
      %c13 = arith.constant 13 : index
      %124 = memref.load %arg2[%c13] : memref<18xf32, #tpu.memory_space<smem>>
      %125 = vector.broadcast %124 : f32 to vector<1x256xf32>
      %126 = arith.mulf %125, %18 : vector<1x256xf32>
      %127 = arith.addf %123, %126 : vector<1x256xf32>
      %c255_i32_36 = arith.constant 255 : i32
      %128 = tpu.dynamic_rotate %18 by %c255_i32_36 dim 1 : vector<1x256xf32>, i32 -> vector<1x256xf32>
      %cst_37 = arith.constant 0.000000e+00 : f32
      %129 = vector.broadcast %cst_37 : f32 to vector<1x256xf32>
      %130 = arith.select %28, %128, %129 : vector<1x256xi1>, vector<1x256xf32>
      %c14 = arith.constant 14 : index
      %131 = memref.load %arg2[%c14] : memref<18xf32, #tpu.memory_space<smem>>
      %132 = vector.broadcast %131 : f32 to vector<1x256xf32>
      %133 = arith.mulf %132, %130 : vector<1x256xf32>
      %134 = arith.addf %127, %133 : vector<1x256xf32>
      %c241_i32_38 = arith.constant 241 : i32
      %135 = tpu.dynamic_rotate %18 by %c241_i32_38 dim 1 : vector<1x256xf32>, i32 -> vector<1x256xf32>
      %136 = arith.andi %24, %26 : vector<1x256xi1>
      %cst_39 = arith.constant 0.000000e+00 : f32
      %137 = vector.broadcast %cst_39 : f32 to vector<1x256xf32>
      %138 = arith.select %136, %135, %137 : vector<1x256xi1>, vector<1x256xf32>
      %c15 = arith.constant 15 : index
      %139 = memref.load %arg2[%c15] : memref<18xf32, #tpu.memory_space<smem>>
      %140 = vector.broadcast %139 : f32 to vector<1x256xf32>
      %141 = arith.mulf %140, %138 : vector<1x256xf32>
      %142 = arith.addf %134, %141 : vector<1x256xf32>
      %c240_i32_40 = arith.constant 240 : i32
      %143 = tpu.dynamic_rotate %18 by %c240_i32_40 dim 1 : vector<1x256xf32>, i32 -> vector<1x256xf32>
      %cst_41 = arith.constant 0.000000e+00 : f32
      %144 = vector.broadcast %cst_41 : f32 to vector<1x256xf32>
      %145 = arith.select %24, %143, %144 : vector<1x256xi1>, vector<1x256xf32>
      %c16 = arith.constant 16 : index
      %146 = memref.load %arg2[%c16] : memref<18xf32, #tpu.memory_space<smem>>
      %147 = vector.broadcast %146 : f32 to vector<1x256xf32>
      %148 = arith.mulf %147, %145 : vector<1x256xf32>
      %149 = arith.addf %142, %148 : vector<1x256xf32>
      %c239_i32_42 = arith.constant 239 : i32
      %150 = tpu.dynamic_rotate %18 by %c239_i32_42 dim 1 : vector<1x256xf32>, i32 -> vector<1x256xf32>
      %151 = arith.andi %24, %28 : vector<1x256xi1>
      %cst_43 = arith.constant 0.000000e+00 : f32
      %152 = vector.broadcast %cst_43 : f32 to vector<1x256xf32>
      %153 = arith.select %151, %150, %152 : vector<1x256xi1>, vector<1x256xf32>
      %c17 = arith.constant 17 : index
      %154 = memref.load %arg2[%c17] : memref<18xf32, #tpu.memory_space<smem>>
      %155 = vector.broadcast %154 : f32 to vector<1x256xf32>
      %156 = arith.mulf %155, %153 : vector<1x256xf32>
      %157 = arith.addf %149, %156 : vector<1x256xf32>
      %158 = arith.negf %157 : vector<1x256xf32>
      %159 = math.exp %158 : vector<1x256xf32>
      %cst_44 = arith.constant 1.000000e+00 : f32
      %160 = vector.broadcast %cst_44 : f32 to vector<1x256xf32>
      %161 = arith.addf %160, %159 : vector<1x256xf32>
      %162 = arith.divf %160, %161 : vector<1x256xf32>
      %c0_45 = arith.constant 0 : index
      %c0_46 = arith.constant 0 : index
      %c0_47 = arith.constant 0 : index
      %163 = vector.load %arg5[%c0_45, %c0_46, %c0_47] : memref<1x1x256xf32, #tpu.memory_space<vmem>>, vector<1x1x256xf32>
      %164 = vector.shape_cast %163 : vector<1x1x256xf32> to vector<1x256xf32>
      %165 = vector.shape_cast %162 : vector<1x256xf32> to vector<1x1x256xf32>
      tpu.vector_store %arg5[%c0_45, %c0_46, %c0_47], %165 {strides = array<i32>} : memref<1x1x256xf32, #tpu.memory_space<vmem>>, vector<1x1x256xf32>,
    } else {
    }
    return
  }
  func.func @transform_0(%arg0: i32, %arg1: i32) -> i32 {
    %c0_i32 = arith.constant 0 : i32
    %c0_i32_0 = arith.constant 0 : i32
    return %c0_i32 : i32
  }
  func.func @transform_1(%arg0: i32, %arg1: i32) -> (i32, i32) {
    %c0_i32 = arith.constant 0 : i32
    %c0_i32_0 = arith.constant 0 : i32
    %c0_i32_1 = arith.constant 0 : i32
    return %c0_i32, %c0_i32_0 : i32, i32
  }
  func.func @transform_2(%arg0: i32, %arg1: i32) -> (i32, i32, i32) {
    %c0_i32 = arith.constant 0 : i32
    %c0_i32_0 = arith.constant 0 : i32
    return %arg0, %arg1, %c0_i32 : i32, i32, i32
  }
  func.func @transform_3(%arg0: i32, %arg1: i32) -> (i32, i32, i32) {
    %c0_i32 = arith.constant 0 : i32
    %c0_i32_0 = arith.constant 0 : i32
    %c0_i32_1 = arith.constant 0 : i32
    return %arg0, %c0_i32, %c0_i32_0 : i32, i32, i32
  }
}

</mosaic_0001>

<llo_original>
// kernel: tpu_custom_call.1
$region0: #{tpu_custom_call.1}
  #allocation0 [shape = 'u32[]', space=smem, size = 0x4, offset = 0x4, fixed_abs, tag = 'smem constant byte address 0x4 - core index']
  #allocation1 [shape = 'u32[144,128]{1,0:T(1,128)}', space=vmem, size = 0x12000, scoped, tag = 'internal scratch']
  #allocation2 [shape = 'f32[1,256]{1,0:T(1,128)}', space=vmem, size = 0x400, scoped, tag = 'scratch operand']
  #allocation3 [shape = 'f32[1,256]{1,0:T(1,128)}', space=vmem, size = 0x400, scoped, tag = 'scratch operand']
  %s0 = inlined_call_operand.hbm [shape: f32[18], index: 0, kind: input, shape index: {}]
  %s1 = inlined_call_operand.hbm [shape: s32[1,256], index: 1, kind: input, shape index: {}]
  %s2 = inlined_call_operand.hbm [shape: f32[2,4,256], index: 2, kind: input, shape index: {}]
  %s3 = inlined_call_operand.hbm [shape: f32[2,1,256], index: 3, kind: output, shape index: {}]
  %s4 = sld [smem:[#allocation0]]
  $region69: #{tpu_custom_call.1} parent=0
    _
  %s6 = ssub.s32 1, %s4
  %s7 = scalar_select 0, %s6, %s4
  $region1: #{tpu_custom_call.1} parent=0
    #allocation4 [shape = 'u8[512]{0}', space=smem, size = 0x200, scoped, tag = 'input window, operand 0, single buffered']
    #allocation5 [shape = 's32[2]{0}', space=sflag, size = 0x8, scoped, tag = 'scoped memory for tpu_custom_call.1']
    #allocation6 [shape = 's32[2]{0}', space=sflag, size = 0x8, scoped, tag = 'scoped memory for tpu_custom_call.1']
    #allocation7 [shape = 's32[2]{0}', space=sflag, size = 0x8, scoped, tag = 'scoped memory for tpu_custom_call.1']
    #allocation8 [shape = 'u8[1024]{0}', space=vmem, size = 0x400, scoped, tag = 'input window, operand 1, single buffered']
    #allocation9 [shape = 'u8[8192]{0}', space=vmem, size = 0x2000, scoped, tag = 'input window, operand 2']
    #allocation10 [shape = 's32[2]{0}', space=sflag, size = 0x8, scoped, tag = 'scoped memory for tpu_custom_call.1']
    #allocation11 [shape = 'u8[2048]{0}', space=vmem, size = 0x800, scoped, tag = 'output window, operand 0']
    %8 = vsyncpa [#allocation7], 0
    %9 = vsyncpa [#allocation5], 0
    %10 = vsyncpa [#allocation10], 0
    %s11 = scalar_lea.sflag [#allocation10], 1
    %12 = vsyncpa %s11, 0
    %13 = vsyncpa [#allocation6], 0
    %s14 = scalar_lea.sflag [#allocation6], 1
    %15 = vsyncpa %s14, 0
    loop: start=0, step=1, limit=4
    $region2: #{tpu_custom_call.1} parent=1 // loop_pre_header
      _
    $region3: #{tpu_custom_call.1} parent=1 // loop_header
      %s17 = sphi 0, %s21
      %p18 = scmp.ge.s32.totalorder %s17, 4
      %s24 = sphi 0, %s36
      %s25 = sphi 0, %s32
      %s26 = sphi 0, %s24
      %s27 = sphi 0, %s25
      %s28 = sphi 0, %s26
      %s29 = sphi 0, %s27
      %s37 = sphi 0, %s37
      %s39 = sphi 0, %s37
      %s40 = sphi 0, %s39
      %s54 = sphi 0, %s40
      %s58 = sphi 0, %s58
      %s60 = sphi 0, %s58
      %s61 = sphi 0, %s60
      %s75 = sphi 0, %s61
      %s83 = sphi 0, %s85
      %s86 = sphi 0, %s83
      %s87 = sphi 0, %s86
      %s103 = sphi 0, %s87
      %s109 = sphi 0, %s111
      %s112 = sphi 0, %s109
      %s113 = sphi 0, %s112
      %s129 = sphi 0, %s113
    $region4: #{tpu_custom_call.1} parent=1 // loop_header_branch
      %20 = sbr.rel (%p18) target = $region8
    $region5: #{tpu_custom_call.1} parent=1 // loop_body
      %s22 = ssub.s32 %s17, 1
      %s23 = ssub.s32 %s17, 2
      %s30 = sadd.s32 1, %s25
      %p31 = scmp.ge.s32.totalorder %s30, 1
      %s32 = scalar_select %p31, 0, %s30
      %s33 = sadd.s32 1, %s24
      %s34 = scalar_select %p31, %s33, %s24
      %p35 = scmp.ge.s32.totalorder %s34, 2
      %s36 = scalar_select %p35, 0, %s34
      %s38 = sadd.s32 %s37, 1
      %p41 = scmp.eq.s32.totalorder %s17, 1
      %p42 = scmp.ne.s32.totalorder %s37, %s39
      %p43 = scmp.eq.s32.totalorder %s17, 0
      %p44 = por %p42, %p43
      %p45 = scmp.ne.s32.totalorder %s37, %s39
      %p46 = scmp.eq.s32.totalorder %s22, 1
      %p47 = por %p45, %p46
      %p48 = scmp.ne.s32.totalorder %s39, %s40
      %p49 = scmp.eq.s32.totalorder %s22, 0
      %p50 = por %p48, %p49
      %p51 = scmp.ne.s32.totalorder %s39, %s40
      %p52 = scmp.eq.s32.totalorder %s23, 1
      %p53 = por %p51, %p52
      %p55 = scmp.ne.s32.totalorder %s40, %s54
      %p56 = scmp.eq.s32.totalorder %s23, 0
      %p57 = por %p55, %p56
      %s59 = sadd.s32 %s58, 1
      %p62 = scmp.eq.s32.totalorder %s17, 1
      %p63 = scmp.ne.s32.totalorder %s58, %s60
      %p64 = scmp.eq.s32.totalorder %s17, 0
      %p65 = por %p63, %p64
      %p66 = scmp.ne.s32.totalorder %s58, %s60
      %p67 = scmp.eq.s32.totalorder %s22, 1
      %p68 = por %p66, %p67
      %p69 = scmp.ne.s32.totalorder %s60, %s61
      %p70 = scmp.eq.s32.totalorder %s22, 0
      %p71 = por %p69, %p70
      %p72 = scmp.ne.s32.totalorder %s60, %s61
      %p73 = scmp.eq.s32.totalorder %s23, 1
      %p74 = por %p72, %p73
      %p76 = scmp.ne.s32.totalorder %s61, %s75
      %p77 = scmp.eq.s32.totalorder %s23, 0
      %p78 = por %p76, %p77
      %s79 = ssub.s32 %s24, %s36
      %s80 = ssub.s32 %s25, %s32
      %s81 = sor.u32 %s79, %s80
      %p82 = scmp.eq.s32.totalorder %s81, 0
      %s84 = sadd.s32 %s83, 1
      %s85 = scalar_select %p82, %s83, %s84
      %p88 = pneg %p82
      %p89 = scmp.eq.s32.totalorder %s17, 1
      %p90 = por %p88, %p89
      %p91 = scmp.ne.s32.totalorder %s83, %s86
      %p92 = scmp.eq.s32.totalorder %s17, 0
      %p93 = por %p91, %p92
      %p94 = scmp.ne.s32.totalorder %s83, %s86
      %p95 = scmp.eq.s32.totalorder %s22, 1
      %p96 = por %p94, %p95
      %p97 = scmp.ne.s32.totalorder %s86, %s87
      %p98 = scmp.eq.s32.totalorder %s22, 0
      %p99 = por %p97, %p98
      %p100 = scmp.ne.s32.totalorder %s86, %s87
      %p101 = scmp.eq.s32.totalorder %s23, 1
      %p102 = por %p100, %p101
      %p104 = scmp.ne.s32.totalorder %s87, %s103
      %p105 = scmp.eq.s32.totalorder %s23, 0
      %p106 = por %p104, %p105
      %s107 = ssub.s32 %s24, %s36
      %p108 = scmp.eq.s32.totalorder %s107, 0
      %s110 = sadd.s32 %s109, 1
      %s111 = scalar_select %p108, %s109, %s110
      %p114 = pneg %p108
      %p115 = scmp.eq.s32.totalorder %s17, 1
      %p116 = por %p114, %p115
      %p117 = scmp.ne.s32.totalorder %s109, %s112
      %p118 = scmp.eq.s32.totalorder %s17, 0
      %p119 = por %p117, %p118
      %p120 = scmp.ne.s32.totalorder %s109, %s112
      %p121 = scmp.eq.s32.totalorder %s22, 1
      %p122 = por %p120, %p121
      %p123 = scmp.ne.s32.totalorder %s112, %s113
      %p124 = scmp.eq.s32.totalorder %s22, 0
      %p125 = por %p123, %p124
      %p126 = scmp.ne.s32.totalorder %s112, %s113
      %p127 = scmp.eq.s32.totalorder %s23, 1
      %p128 = por %p126, %p127
      %p130 = scmp.ne.s32.totalorder %s113, %s129
      %p131 = scmp.eq.s32.totalorder %s23, 0
      %p132 = por %p130, %p131
      %p133 = scmp.le.s32.totalorder 1, %s17
      %p134 = scmp.lt.s32.totalorder %s17, 3
      %p135 = pnand %p133, %p134
      %p136 = pneg %p135
      // Predicated region
      $region9: #{tpu_custom_call.1} parent=5 // pred_check
        _
      $region10: #{tpu_custom_call.1} parent=5 // pred_check_branch
        %138 = sbr.rel (%p135) target = $region12
      $region11: #{tpu_custom_call.1} parent=5 // pred_region
        %s139 = ssub.s32 %s17, 1
        // Predicated region
        $region13: #{tpu_custom_call.1} parent=11 // pred_check
          %p140 = pneg %p50
        $region14: #{tpu_custom_call.1} parent=11 // pred_check_branch
          %142 = sbr.rel (%p140) target = $region16
        $region15: #{tpu_custom_call.1} parent=11 // pred_region
          %s144 = ssub.s32 16, 16
          %145 = vsyncadd [#allocation7], %s144
          %148 = dma.hbm_to_smem %s0, 16, [#allocation4], [#allocation7]
        $region16: #{tpu_custom_call.1} parent=11 // pred_fallthru
          _
        // Predicated region
        $region17: #{tpu_custom_call.1} parent=11 // pred_check
          %p149 = pneg %p71
        $region18: #{tpu_custom_call.1} parent=11 // pred_check_branch
          %151 = sbr.rel (%p149) target = $region20
        $region19: #{tpu_custom_call.1} parent=11 // pred_region
          %s153 = ssub.s32 32, 32
          %154 = vsyncadd [#allocation5], %s153
          %s156 = sshll.u32 [#allocation8], 4
          %s157 = int_to_ptr.vmem [resolvable:$true] %s156
          %159 = dma.hbm_to_vmem [thread:$0]  %s1, 32, %s157, [#allocation5]
        $region20: #{tpu_custom_call.1} parent=11 // pred_fallthru
          _
      $region12: #{tpu_custom_call.1} parent=5 // pred_fallthru
        _
      %p160 = scmp.lt.s32.totalorder %s17, 2
      // Predicated region
      $region21: #{tpu_custom_call.1} parent=5 // pred_check
        %p161 = pneg %p160
      $region22: #{tpu_custom_call.1} parent=5 // pred_check_branch
        %163 = sbr.rel (%p161) target = $region24
      $region23: #{tpu_custom_call.1} parent=5 // pred_region
        // Predicated region
        $region25: #{tpu_custom_call.1} parent=23 // pred_check
          %p164 = pneg %p93
        $region26: #{tpu_custom_call.1} parent=23 // pred_check_branch
          %166 = sbr.rel (%p164) target = $region28
        $region27: #{tpu_custom_call.1} parent=23 // pred_region
          %s167 = sand.u32 %s83, 1
          %s168 = scalar_lea.sflag [#allocation10], %s167
          %s169 = sand.u32 %s83, 1
          %s170 = smul.addr %s169, 8
          %s171 = scalar_lea.vmem [#allocation9], %s170
          %s173 = ssub.s32 128, 128
          %174 = vsyncadd %s168, %s173
          %s175 = smul.addr %s25, 2
          %s176 = smul.addr %s24, 2
          %s177 = sadd.s32 %s175, %s176
          %s178 = smul.addr %s177, 64
          %s179 = scalar_lea.hbm %s2, %s178
          %s181 = sshll.u32 %s171, 4
          %s182 = int_to_ptr.vmem [resolvable:$true] %s181
          %184 = dma.hbm_to_vmem [thread:$0]  %s179, 128, %s182, %s168
        $region28: #{tpu_custom_call.1} parent=23 // pred_fallthru
          _
      $region24: #{tpu_custom_call.1} parent=5 // pred_fallthru
        _
      %p185 = scmp.le.s32.totalorder 1, %s17
      %p186 = scmp.lt.s32.totalorder %s17, 3
      %p187 = pnand %p185, %p186
      %p188 = pneg %p187
      // Predicated region
      $region29: #{tpu_custom_call.1} parent=5 // pred_check
        _
      $region30: #{tpu_custom_call.1} parent=5 // pred_check_branch
        %190 = sbr.rel (%p187) target = $region32
      $region31: #{tpu_custom_call.1} parent=5 // pred_region
        %s191 = ssub.s32 %s17, 1
        // Predicated region
        $region33: #{tpu_custom_call.1} parent=31 // pred_check
          %p192 = pneg %p50
        $region34: #{tpu_custom_call.1} parent=31 // pred_check_branch
          %194 = sbr.rel (%p192) target = $region36
        $region35: #{tpu_custom_call.1} parent=31 // pred_region
          %195 = dma.done [#allocation7], 16
        $region36: #{tpu_custom_call.1} parent=31 // pred_fallthru
          _
        // Predicated region
        $region37: #{tpu_custom_call.1} parent=31 // pred_check
          %p196 = pneg %p71
        $region38: #{tpu_custom_call.1} parent=31 // pred_check_branch
          %198 = sbr.rel (%p196) target = $region40
        $region39: #{tpu_custom_call.1} parent=31 // pred_region
          %199 = dma.done [#allocation5], 32
        $region40: #{tpu_custom_call.1} parent=31 // pred_fallthru
          _
        %s200 = sand.u32 %s86, 1
        %s201 = scalar_lea.sflag [#allocation10], %s200
        %s202 = sand.u32 %s86, 1
        %s203 = smul.addr %s202, 8
        %s204 = scalar_lea.vmem [#allocation9], %s203
        // Predicated region
        $region41: #{tpu_custom_call.1} parent=31 // pred_check
          %p205 = pneg %p99
        $region42: #{tpu_custom_call.1} parent=31 // pred_check_branch
          %207 = sbr.rel (%p205) target = $region44
        $region43: #{tpu_custom_call.1} parent=31 // pred_region
          %208 = dma.done %s201, 128
        $region44: #{tpu_custom_call.1} parent=31 // pred_fallthru
          _
        %209 = sfence
        %p210 = pneg %p50
        %p211 = pneg %p47
        %p212 = pneg %p71
        %p213 = pneg %p68
        %s214 = sand.u32 %s86, 1
        %s215 = scalar_lea.sflag [#allocation10], %s214
        %s216 = sand.u32 %s86, 1
        %s217 = smul.addr %s216, 8
        %s218 = scalar_lea.vmem [#allocation9], %s217
        %p219 = pneg %p99
        %p220 = pneg %p96
        %p221 = pneg %p125
        %p222 = pneg %p122
        %s223 = sand.u32 %s112, 1
        %s224 = scalar_lea.sflag [#allocation6], %s223
        %s225 = sand.u32 %s112, 1
        %s226 = smul.addr %s225, 2
        %s227 = scalar_lea.vmem [#allocation11], %s226
        %v228 = vld [vmem:[%s204] sm:$0xff]
        %v230 = vcombine.high %v228, %v228
        %vm232 = vcmask 1043456
        %v233 = vsel %vm232, %v228, 0.0
        %v234 = vrot.slane %v233, 4
        %v235 = vadd.f32 %v233, %v234
        %v236 = vrot.slane %v235, 2
        %v237 = vadd.f32 %v235, %v236
        %v238 = vrot.slane %v237, 1
        %v239 = vadd.f32 %v237, %v238
        %v240 = vsel %vm232, %v230, 0.0
        %v241 = vrot.slane %v240, 4
        %v242 = vadd.f32 %v240, %v241
        %v243 = vrot.slane %v242, 2
        %v244 = vadd.f32 %v242, %v243
        %v245 = vrot.slane %v244, 1
        %v246 = vadd.f32 %v244, %v245
        %v247 = vsel %vm232, %v228, -inf
        %v248 = vrot.slane %v247, 4
        %v249 = vmax.f32 %v247, %v248
        %v250 = vrot.slane %v249, 2
        %v251 = vmax.f32 %v249, %v250
        %v252 = vrot.slane %v251, 1
        %v253 = vmax.f32 %v251, %v252
        %v254 = vsel %vm232, %v230, -inf
        %v255 = vrot.slane %v254, 4
        %v256 = vmax.f32 %v254, %v255
        %v257 = vrot.slane %v256, 2
        %v258 = vmax.f32 %v256, %v257
        %v259 = vrot.slane %v258, 1
        %v260 = vmax.f32 %v258, %v259
        %p261 = scmp.eq.s32.totalorder %s27, 0
        // Predicated region
        $region45: #{tpu_custom_call.1} parent=31 // pred_check
          %p262 = pneg %p261
        $region46: #{tpu_custom_call.1} parent=31 // pred_check_branch
          %264 = sbr.rel (%p262) target = $region48
        $region47: #{tpu_custom_call.1} parent=31 // pred_region
          %v267 = vcombine.low %v239, %v246
          %v269 = vunpack.c.l.s4 1966171168
          %v270 = vunpack.c.0.s8 %v269
          %v271 = vlaneseq
          %v272 = vshrl.u32 %v271, 7
          %v273 = vsub.s32 %v270, %v272
          %v274 = vrot.slane %v267, %v273
          %v276 = vunpack.c.l.s4 1966171168
          %v277 = vunpack.c.0.s8 %v276
          %v278 = vlaneseq
          %v279 = vshrl.u32 %v278, 7
          %v280 = vsub.s32 %v277, %v279
          %v281 = vrot.slane %v274, %v280
          %v283 = vlaneseq
          %vm284 = vcmp.ge.s32.totalorder %v283, 0
          %vm285 = vcmp.lt.s32.totalorder %v283, 256
          %vm286 = vmand %vm284, %vm285
          %287 = vst.msk [vmem:[#allocation2] sm:$0x3] %vm286, %v281
          %v290 = vcombine.low %v253, %v260
          %v292 = vunpack.c.l.s4 1966171168
          %v293 = vunpack.c.0.s8 %v292
          %v294 = vlaneseq
          %v295 = vshrl.u32 %v294, 7
          %v296 = vsub.s32 %v293, %v295
          %v297 = vrot.slane %v290, %v296
          %v299 = vunpack.c.l.s4 1966171168
          %v300 = vunpack.c.0.s8 %v299
          %v301 = vlaneseq
          %v302 = vshrl.u32 %v301, 7
          %v303 = vsub.s32 %v300, %v302
          %v304 = vrot.slane %v297, %v303
          %306 = vst.msk [vmem:[#allocation3] sm:$0x3] %vm286, %v304
        $region48: #{tpu_custom_call.1} parent=31 // pred_fallthru
          _
        %p307 = scmp.gt.s32.totalorder %s27, 0
        // Predicated region
        $region49: #{tpu_custom_call.1} parent=31 // pred_check
          %p308 = pneg %p307
        $region50: #{tpu_custom_call.1} parent=31 // pred_check_branch
          %310 = sbr.rel (%p308) target = $region52
        $region51: #{tpu_custom_call.1} parent=31 // pred_region
          %v311 = vld [vmem:[#allocation2] sm:$0x3]
          %v314 = vcombine.low %v239, %v246
          %v316 = vunpack.c.l.s4 1966171168
          %v317 = vunpack.c.0.s8 %v316
          %v318 = vlaneseq
          %v319 = vshrl.u32 %v318, 7
          %v320 = vsub.s32 %v317, %v319
          %v321 = vrot.slane %v314, %v320
          %v323 = vunpack.c.l.s4 1966171168
          %v324 = vunpack.c.0.s8 %v323
          %v325 = vlaneseq
          %v326 = vshrl.u32 %v325, 7
          %v327 = vsub.s32 %v324, %v326
          %v328 = vrot.slane %v321, %v327
          %v330 = vadd.f32 %v311, %v328
          %v331 = vlaneseq
          %vm332 = vcmp.ge.s32.totalorder %v331, 0
          %vm333 = vcmp.lt.s32.totalorder %v331, 256
          %vm334 = vmand %vm332, %vm333
          %335 = vst.msk [vmem:[#allocation2] sm:$0x3] %vm334, %v330
          %v336 = vld [vmem:[#allocation3] sm:$0x3]
          %v339 = vcombine.low %v253, %v260
          %v341 = vunpack.c.l.s4 1966171168
          %v342 = vunpack.c.0.s8 %v341
          %v343 = vlaneseq
          %v344 = vshrl.u32 %v343, 7
          %v345 = vsub.s32 %v342, %v344
          %v346 = vrot.slane %v339, %v345
          %v348 = vunpack.c.l.s4 1966171168
          %v349 = vunpack.c.0.s8 %v348
          %v350 = vlaneseq
          %v351 = vshrl.u32 %v350, 7
          %v352 = vsub.s32 %v349, %v351
          %v353 = vrot.slane %v346, %v352
          %v355 = vmax.f32 %v336, %v353
          %356 = vst.msk [vmem:[#allocation3] sm:$0x3] %vm334, %v355
        $region52: #{tpu_custom_call.1} parent=31 // pred_fallthru
          _
        // Predicated region
        $region53: #{tpu_custom_call.1} parent=31 // pred_check
          %p357 = pneg %p261
        $region54: #{tpu_custom_call.1} parent=31 // pred_check_branch
          %359 = sbr.rel (%p357) target = $region56
        $region55: #{tpu_custom_call.1} parent=31 // pred_region
          %v360 = vld [vmem:[#allocation2] sm:$0x3]
          %v361 = vmul.f32 %v360, 0.25
          %v362 = vld [vmem:[#allocation3] sm:$0x3]
          %v363 = vld [vmem:[#allocation8] sm:$0x3]
          %v364 = vlaneseq
          %v365 = vand.u32 %v364, 127
          %v366 = vadd.s32 %v365, 128
          %vm367 = vcmp.ge.s32.totalorder %v365, 16
          %vm368 = vcmp.ge.s32.totalorder %v366, 16
          %vm369 = vcmp.lt.s32.totalorder %v365, 240
          %vm370 = vcmp.lt.s32.totalorder %v366, 240
          %vm371 = vcmp.ge.s32.totalorder %v363, 1
          %vm372 = vcmp.le.s32.totalorder %v363, 14
          %v374 = vlaneseq
          %v375 = vshrl.u32 %v374, 7
          %v376 = vsub.s32 0, %v375
          %v377 = vrot.slane %v361, %v376
          %v378 = vlaneseq
          %v379 = vshrl.u32 %v378, 7
          %v380 = vsub.s32 1, %v379
          %v381 = vrot.slane %v361, %v380
          %384 = vrot.lane.b32.xlu0 %v377, 17
          %v385 = vpop.permute.xlu0 %384
          %386 = vrot.lane.b32.xlu0 %v381, 17
          %v387 = vpop.permute.xlu0 %386
          %vm388 = vcmp.lt.s32.totalorder %v365, 17
          %v389 = vsel %vm388, %v385, %v387
          %v390 = vsel %vm388, %v387, %v385
          %v391 = vsel %vm371, 1, 0
          %v392 = vlaneseq
          %v393 = vshrl.u32 %v392, 7
          %v394 = vsub.s32 0, %v393
          %v395 = vrot.slane %v391, %v394
          %v396 = vlaneseq
          %v397 = vshrl.u32 %v396, 7
          %v398 = vsub.s32 1, %v397
          %v399 = vrot.slane %v391, %v398
          %vm400 = vcmp.ne.s32.totalorder %v395, 0
          %vm401 = vcmp.ne.s32.totalorder %v399, 0
          %vm402 = vmand %vm367, %vm400
          %vm403 = vmand %vm368, %vm401
          %v404 = vsel %vm402, %v390, 0.0
          %v405 = vsel %vm403, %v389, 0.0
          %s406 = sld [smem:[#allocation4]]
          %v407 = vstv %s406
          %v408 = vmul.f32 %v407, %v404
          %v409 = vmul.f32 %v407, %v405
          %v410 = vadd.f32 %v408, 0.0
          %v411 = vadd.f32 %v409, 0.0
          %412 = vrot.lane.b32.xlu0 %v377, 16
          %v413 = vpop.permute.xlu0 %412
          %414 = vrot.lane.b32.xlu0 %v381, 16
          %v415 = vpop.permute.xlu0 %414
          %vm416 = vcmp.lt.s32.totalorder %v365, 16
          %v417 = vsel %vm416, %v413, %v415
          %v418 = vsel %vm416, %v415, %v413
          %v419 = vsel %vm367, %v418, 0.0
          %v420 = vsel %vm368, %v417, 0.0
          %s421 = sld [smem:[#allocation4 + $0x1]]
          %v422 = vstv %s421
          %v423 = vmul.f32 %v422, %v419
          %v424 = vmul.f32 %v422, %v420
          %v425 = vadd.f32 %v410, %v423
          %v426 = vadd.f32 %v411, %v424
          %427 = vrot.lane.b32.xlu0 %v377, 15
          %v428 = vpop.permute.xlu0 %427
          %429 = vrot.lane.b32.xlu0 %v381, 15
          %v430 = vpop.permute.xlu0 %429
          %vm431 = vcmp.lt.s32.totalorder %v365, 15
          %v432 = vsel %vm431, %v428, %v430
          %v433 = vsel %vm431, %v430, %v428
          %v434 = vsel %vm372, 1, 0
          %v435 = vlaneseq
          %v436 = vshrl.u32 %v435, 7
          %v437 = vsub.s32 0, %v436
          %v438 = vrot.slane %v434, %v437
          %v439 = vlaneseq
          %v440 = vshrl.u32 %v439, 7
          %v441 = vsub.s32 1, %v440
          %v442 = vrot.slane %v434, %v441
          %vm443 = vcmp.ne.s32.totalorder %v438, 0
          %vm444 = vcmp.ne.s32.totalorder %v442, 0
          %vm445 = vmand %vm367, %vm443
          %vm446 = vmand %vm368, %vm444
          %v447 = vsel %vm445, %v433, 0.0
          %v448 = vsel %vm446, %v432, 0.0
          %s449 = sld [smem:[#allocation4 + $0x2]]
          %v450 = vstv %s449
          %v451 = vmul.f32 %v450, %v447
          %v452 = vmul.f32 %v450, %v448
          %v453 = vadd.f32 %v425, %v451
          %v454 = vadd.f32 %v426, %v452
          %455 = vrot.lane.b32.xlu0 %v377, 1
          %v456 = vpop.permute.xlu0 %455
          %457 = vrot.lane.b32.xlu0 %v381, 1
          %v458 = vpop.permute.xlu0 %457
          %vm459 = vcmp.lt.s32.totalorder %v365, 1
          %v460 = vsel %vm459, %v456, %v458
          %v461 = vsel %vm459, %v458, %v456
          %v464 = vcombine.low %v461, %v460
          %v466 = vunpack.c.l.s4 1966171168
          %v467 = vunpack.c.0.s8 %v466
          %v468 = vlaneseq
          %v469 = vshrl.u32 %v468, 7
          %v470 = vsub.s32 %v467, %v469
          %v471 = vrot.slane %v464, %v470
          %v473 = vunpack.c.l.s4 1966171168
          %v474 = vunpack.c.0.s8 %v473
          %v475 = vlaneseq
          %v476 = vshrl.u32 %v475, 7
          %v477 = vsub.s32 %v474, %v476
          %v478 = vrot.slane %v471, %v477
          %v480 = vsel %vm371, %v478, 0.0
          %s481 = sld [smem:[#allocation4 + $0x3]]
          %v482 = vstv %s481
          %v483 = vmul.f32 %v482, %v480
          %v485 = vlaneseq
          %v486 = vshrl.u32 %v485, 7
          %v487 = vsub.s32 0, %v486
          %v488 = vrot.slane %v483, %v487
          %v489 = vlaneseq
          %v490 = vshrl.u32 %v489, 7
          %v491 = vsub.s32 1, %v490
          %v492 = vrot.slane %v483, %v491
          %v495 = vadd.f32 %v453, %v488
          %v496 = vadd.f32 %v454, %v492
          %s497 = sld [smem:[#allocation4 + $0x4]]
          %v498 = vstv %s497
          %v499 = vmul.f32 %v498, %v361
          %v501 = vlaneseq
          %v502 = vshrl.u32 %v501, 7
          %v503 = vsub.s32 0, %v502
          %v504 = vrot.slane %v499, %v503
          %v505 = vlaneseq
          %v506 = vshrl.u32 %v505, 7
          %v507 = vsub.s32 1, %v506
          %v508 = vrot.slane %v499, %v507
          %v511 = vadd.f32 %v495, %v504
          %v512 = vadd.f32 %v496, %v508
          %513 = vrot.lane.b32.xlu0 %v377, 127
          %v514 = vpop.permute.xlu0 %513
          %515 = vrot.lane.b32.xlu0 %v381, 127
          %v516 = vpop.permute.xlu0 %515
          %vm517 = vcmp.lt.s32.totalorder %v365, 127
          %v518 = vsel %vm517, %v514, %v516
          %v519 = vsel %vm517, %v516, %v514
          %v522 = vcombine.low %v518, %v519
          %v524 = vunpack.c.l.s4 1966171168
          %v525 = vunpack.c.0.s8 %v524
          %v526 = vlaneseq
          %v527 = vshrl.u32 %v526, 7
          %v528 = vsub.s32 %v525, %v527
          %v529 = vrot.slane %v522, %v528
          %v531 = vunpack.c.l.s4 1966171168
          %v532 = vunpack.c.0.s8 %v531
          %v533 = vlaneseq
          %v534 = vshrl.u32 %v533, 7
          %v535 = vsub.s32 %v532, %v534
          %v536 = vrot.slane %v529, %v535
          %v538 = vsel %vm372, %v536, 0.0
          %s539 = sld [smem:[#allocation4 + $0x5]]
          %v540 = vstv %s539
          %v541 = vmul.f32 %v540, %v538
          %v543 = vlaneseq
          %v544 = vshrl.u32 %v543, 7
          %v545 = vsub.s32 0, %v544
          %v546 = vrot.slane %v541, %v545
          %v547 = vlaneseq
          %v548 = vshrl.u32 %v547, 7
          %v549 = vsub.s32 1, %v548
          %v550 = vrot.slane %v541, %v549
          %v553 = vadd.f32 %v511, %v546
          %v554 = vadd.f32 %v512, %v550
          %555 = vrot.lane.b32.xlu0 %v377, 113
          %v556 = vpop.permute.xlu0 %555
          %557 = vrot.lane.b32.xlu0 %v381, 113
          %v558 = vpop.permute.xlu0 %557
          %vm559 = vcmp.lt.s32.totalorder %v365, 113
          %v560 = vsel %vm559, %v556, %v558
          %v561 = vsel %vm559, %v558, %v556
          %vm562 = vmand %vm369, %vm400
          %vm563 = vmand %vm370, %vm401
          %v564 = vsel %vm562, %v560, 0.0
          %v565 = vsel %vm563, %v561, 0.0
          %s566 = sld [smem:[#allocation4 + $0x6]]
          %v567 = vstv %s566
          %v568 = vmul.f32 %v567, %v564
          %v569 = vmul.f32 %v567, %v565
          %v570 = vadd.f32 %v553, %v568
          %v571 = vadd.f32 %v554, %v569
          %572 = vrot.lane.b32.xlu0 %v377, 112
          %v573 = vpop.permute.xlu0 %572
          %574 = vrot.lane.b32.xlu0 %v381, 112
          %v575 = vpop.permute.xlu0 %574
          %vm576 = vcmp.lt.s32.totalorder %v365, 112
          %v577 = vsel %vm576, %v573, %v575
          %v578 = vsel %vm576, %v575, %v573
          %v579 = vsel %vm369, %v577, 0.0
          %v580 = vsel %vm370, %v578, 0.0
          %s581 = sld [smem:[#allocation4 + $0x7]]
          %v582 = vstv %s581
          %v583 = vmul.f32 %v582, %v579
          %v584 = vmul.f32 %v582, %v580
          %v585 = vadd.f32 %v570, %v583
          %v586 = vadd.f32 %v571, %v584
          %587 = vrot.lane.b32.xlu0 %v377, 111
          %v588 = vpop.permute.xlu0 %587
          %589 = vrot.lane.b32.xlu0 %v381, 111
          %v590 = vpop.permute.xlu0 %589
          %vm591 = vcmp.lt.s32.totalorder %v365, 111
          %v592 = vsel %vm591, %v588, %v590
          %v593 = vsel %vm591, %v590, %v588
          %vm594 = vmand %vm369, %vm443
          %vm595 = vmand %vm370, %vm444
          %v596 = vsel %vm594, %v592, 0.0
          %v597 = vsel %vm595, %v593, 0.0
          %s598 = sld [smem:[#allocation4 + $0x8]]
          %v599 = vstv %s598
          %v600 = vmul.f32 %v599, %v596
          %v601 = vmul.f32 %v599, %v597
          %v602 = vadd.f32 %v585, %v600
          %v603 = vadd.f32 %v586, %v601
          %v605 = vlaneseq
          %v606 = vshrl.u32 %v605, 7
          %v607 = vsub.s32 0, %v606
          %v608 = vrot.slane %v362, %v607
          %v609 = vlaneseq
          %v610 = vshrl.u32 %v609, 7
          %v611 = vsub.s32 1, %v610
          %v612 = vrot.slane %v362, %v611
          %615 = vrot.lane.b32.xlu0 %v608, 17
          %v616 = vpop.permute.xlu0 %615
          %617 = vrot.lane.b32.xlu0 %v612, 17
          %v618 = vpop.permute.xlu0 %617
          %v619 = vsel %vm388, %v616, %v618
          %v620 = vsel %vm388, %v618, %v616
          %v621 = vsel %vm402, %v620, 0.0
          %v622 = vsel %vm403, %v619, 0.0
          %s623 = sld [smem:[#allocation4 + $0x9]]
          %v624 = vstv %s623
          %v625 = vmul.f32 %v624, %v621
          %v626 = vmul.f32 %v624, %v622
          %v627 = vadd.f32 %v602, %v625
          %v628 = vadd.f32 %v603, %v626
          %629 = vrot.lane.b32.xlu0 %v608, 16
          %v630 = vpop.permute.xlu0 %629
          %631 = vrot.lane.b32.xlu0 %v612, 16
          %v632 = vpop.permute.xlu0 %631
          %v633 = vsel %vm416, %v630, %v632
          %v634 = vsel %vm416, %v632, %v630
          %v635 = vsel %vm367, %v634, 0.0
          %v636 = vsel %vm368, %v633, 0.0
          %s637 = sld [smem:[#allocation4 + $0xa]]
          %v638 = vstv %s637
          %v639 = vmul.f32 %v638, %v635
          %v640 = vmul.f32 %v638, %v636
          %v641 = vadd.f32 %v627, %v639
          %v642 = vadd.f32 %v628, %v640
          %643 = vrot.lane.b32.xlu0 %v608, 15
          %v644 = vpop.permute.xlu0 %643
          %645 = vrot.lane.b32.xlu0 %v612, 15
          %v646 = vpop.permute.xlu0 %645
          %v647 = vsel %vm431, %v644, %v646
          %v648 = vsel %vm431, %v646, %v644
          %v649 = vsel %vm445, %v648, 0.0
          %v650 = vsel %vm446, %v647, 0.0
          %s651 = sld [smem:[#allocation4 + $0xb]]
          %v652 = vstv %s651
          %v653 = vmul.f32 %v652, %v649
          %v654 = vmul.f32 %v652, %v650
          %v655 = vadd.f32 %v641, %v653
          %v656 = vadd.f32 %v642, %v654
          %657 = vrot.lane.b32.xlu0 %v608, 1
          %v658 = vpop.permute.xlu0 %657
          %659 = vrot.lane.b32.xlu0 %v612, 1
          %v660 = vpop.permute.xlu0 %659
          %v661 = vsel %vm459, %v658, %v660
          %v662 = vsel %vm459, %v660, %v658
          %v665 = vcombine.low %v662, %v661
          %v667 = vunpack.c.l.s4 1966171168
          %v668 = vunpack.c.0.s8 %v667
          %v669 = vlaneseq
          %v670 = vshrl.u32 %v669, 7
          %v671 = vsub.s32 %v668, %v670
          %v672 = vrot.slane %v665, %v671
          %v674 = vunpack.c.l.s4 1966171168
          %v675 = vunpack.c.0.s8 %v674
          %v676 = vlaneseq
          %v677 = vshrl.u32 %v676, 7
          %v678 = vsub.s32 %v675, %v677
          %v679 = vrot.slane %v672, %v678
          %v681 = vsel %vm371, %v679, 0.0
          %s682 = sld [smem:[#allocation4 + $0xc]]
          %v683 = vstv %s682
          %v684 = vmul.f32 %v683, %v681
          %v686 = vlaneseq
          %v687 = vshrl.u32 %v686, 7
          %v688 = vsub.s32 0, %v687
          %v689 = vrot.slane %v684, %v688
          %v690 = vlaneseq
          %v691 = vshrl.u32 %v690, 7
          %v692 = vsub.s32 1, %v691
          %v693 = vrot.slane %v684, %v692
          %v696 = vadd.f32 %v655, %v689
          %v697 = vadd.f32 %v656, %v693
          %s698 = sld [smem:[#allocation4 + $0xd]]
          %v699 = vstv %s698
          %v700 = vmul.f32 %v699, %v362
          %v702 = vlaneseq
          %v703 = vshrl.u32 %v702, 7
          %v704 = vsub.s32 0, %v703
          %v705 = vrot.slane %v700, %v704
          %v706 = vlaneseq
          %v707 = vshrl.u32 %v706, 7
          %v708 = vsub.s32 1, %v707
          %v709 = vrot.slane %v700, %v708
          %v712 = vadd.f32 %v696, %v705
          %v713 = vadd.f32 %v697, %v709
          %714 = vrot.lane.b32.xlu0 %v608, 127
          %v715 = vpop.permute.xlu0 %714
          %716 = vrot.lane.b32.xlu0 %v612, 127
          %v717 = vpop.permute.xlu0 %716
          %v718 = vsel %vm517, %v715, %v717
          %v719 = vsel %vm517, %v717, %v715
          %v722 = vcombine.low %v718, %v719
          %v724 = vunpack.c.l.s4 1966171168
          %v725 = vunpack.c.0.s8 %v724
          %v726 = vlaneseq
          %v727 = vshrl.u32 %v726, 7
          %v728 = vsub.s32 %v725, %v727
          %v729 = vrot.slane %v722, %v728
          %v731 = vunpack.c.l.s4 1966171168
          %v732 = vunpack.c.0.s8 %v731
          %v733 = vlaneseq
          %v734 = vshrl.u32 %v733, 7
          %v735 = vsub.s32 %v732, %v734
          %v736 = vrot.slane %v729, %v735
          %v738 = vsel %vm372, %v736, 0.0
          %s739 = sld [smem:[#allocation4 + $0xe]]
          %v740 = vstv %s739
          %v741 = vmul.f32 %v740, %v738
          %v743 = vlaneseq
          %v744 = vshrl.u32 %v743, 7
          %v745 = vsub.s32 0, %v744
          %v746 = vrot.slane %v741, %v745
          %v747 = vlaneseq
          %v748 = vshrl.u32 %v747, 7
          %v749 = vsub.s32 1, %v748
          %v750 = vrot.slane %v741, %v749
          %v753 = vadd.f32 %v712, %v746
          %v754 = vadd.f32 %v713, %v750
          %755 = vrot.lane.b32.xlu0 %v608, 113
          %v756 = vpop.permute.xlu0 %755
          %757 = vrot.lane.b32.xlu0 %v612, 113
          %v758 = vpop.permute.xlu0 %757
          %v759 = vsel %vm559, %v756, %v758
          %v760 = vsel %vm559, %v758, %v756
          %v761 = vsel %vm562, %v759, 0.0
          %v762 = vsel %vm563, %v760, 0.0
          %s763 = sld [smem:[#allocation4 + $0xf]]
          %v764 = vstv %s763
          %v765 = vmul.f32 %v764, %v761
          %v766 = vmul.f32 %v764, %v762
          %v767 = vadd.f32 %v753, %v765
          %v768 = vadd.f32 %v754, %v766
          %769 = vrot.lane.b32.xlu0 %v608, 112
          %v770 = vpop.permute.xlu0 %769
          %771 = vrot.lane.b32.xlu0 %v612, 112
          %v772 = vpop.permute.xlu0 %771
          %v773 = vsel %vm576, %v770, %v772
          %v774 = vsel %vm576, %v772, %v770
          %v775 = vsel %vm369, %v773, 0.0
          %v776 = vsel %vm370, %v774, 0.0
          %s777 = sld [smem:[#allocation4 + $0x10]]
          %v778 = vstv %s777
          %v779 = vmul.f32 %v778, %v775
          %v780 = vmul.f32 %v778, %v776
          %v781 = vadd.f32 %v767, %v779
          %v782 = vadd.f32 %v768, %v780
          %783 = vrot.lane.b32.xlu0 %v608, 111
          %v784 = vpop.permute.xlu0 %783
          %785 = vrot.lane.b32.xlu0 %v612, 111
          %v786 = vpop.permute.xlu0 %785
          %v787 = vsel %vm591, %v784, %v786
          %v788 = vsel %vm591, %v786, %v784
          %v789 = vsel %vm594, %v787, 0.0
          %v790 = vsel %vm595, %v788, 0.0
          %s791 = sld [smem:[#allocation4 + $0x11]]
          %v792 = vstv %s791
          %v793 = vmul.f32 %v792, %v789
          %v794 = vmul.f32 %v792, %v790
          %v795 = vadd.f32 %v781, %v793
          %v796 = vadd.f32 %v782, %v794
          %v797 = vxor.u32 %v795, 2147483648
          %v798 = vxor.u32 %v796, 2147483648
          %v799 = vmul.f32 %v797, 1.442695
          %v800 = vpow.pop %v799
          %v801 = vmul.f32 %v798, 1.442695
          %v802 = vpow.pop %v801
          %v803 = vadd.f32 %v800, 1.0
          %v804 = vadd.f32 %v802, 1.0
          %v805 = vrcp.pop %v803
          %v806 = vmul.f32 1.0, %v805
          %v807 = vrcp.pop %v804
          %v808 = vmul.f32 1.0, %v807
          %v811 = vcombine.low %v806, %v808
          %v813 = vunpack.c.l.s4 1966171168
          %v814 = vunpack.c.0.s8 %v813
          %v815 = vlaneseq
          %v816 = vshrl.u32 %v815, 7
          %v817 = vsub.s32 %v814, %v816
          %v818 = vrot.slane %v811, %v817
          %v820 = vunpack.c.l.s4 1966171168
          %v821 = vunpack.c.0.s8 %v820
          %v822 = vlaneseq
          %v823 = vshrl.u32 %v822, 7
          %v824 = vsub.s32 %v821, %v823
          %v825 = vrot.slane %v818, %v824
          %v827 = vlaneseq
          %vm828 = vcmp.ge.s32.totalorder %v827, 0
          %vm829 = vcmp.lt.s32.totalorder %v827, 256
          %vm830 = vmand %vm828, %vm829
          %831 = vst.msk [vmem:[%s227] sm:$0x3] %vm830, %v825
        $region56: #{tpu_custom_call.1} parent=31 // pred_fallthru
          _
        %s832 = sand.u32 %s112, 1
        %s833 = scalar_lea.sflag [#allocation6], %s832
        %s834 = sand.u32 %s112, 1
        %s835 = smul.addr %s834, 2
        %s836 = scalar_lea.vmem [#allocation11], %s835
        // Predicated region
        $region57: #{tpu_custom_call.1} parent=31 // pred_check
          %p837 = pneg %p122
        $region58: #{tpu_custom_call.1} parent=31 // pred_check_branch
          %839 = sbr.rel (%p837) target = $region60
        $region59: #{tpu_custom_call.1} parent=31 // pred_region
          %s841 = ssub.s32 32, 32
          %842 = vsyncadd %s833, %s841
          %s843 = smul.addr %s26, 2
          %s844 = smul.addr %s843, 16
          %s845 = scalar_lea.hbm %s3, %s844
          %s847 = sshll.u32 %s836, 4
          %s848 = int_to_ptr.vmem [resolvable:$true] %s847
          %850 = dma.vmem_to_hbm [thread:$0]  %s848, 32, %s845, %s833
        $region60: #{tpu_custom_call.1} parent=31 // pred_fallthru
          _
      $region32: #{tpu_custom_call.1} parent=5 // pred_fallthru
        _
      %p851 = scmp.le.s32.totalorder 2, %s17
      // Predicated region
      $region61: #{tpu_custom_call.1} parent=5 // pred_check
        %p852 = pneg %p851
      $region62: #{tpu_custom_call.1} parent=5 // pred_check_branch
        %854 = sbr.rel (%p852) target = $region64
      $region63: #{tpu_custom_call.1} parent=5 // pred_region
        %s855 = ssub.s32 %s17, 2
        // Predicated region
        $region65: #{tpu_custom_call.1} parent=63 // pred_check
          %p856 = pneg %p128
        $region66: #{tpu_custom_call.1} parent=63 // pred_check_branch
          %858 = sbr.rel (%p856) target = $region68
        $region67: #{tpu_custom_call.1} parent=63 // pred_region
          %s859 = sand.u32 %s113, 1
          %s860 = scalar_lea.sflag [#allocation6], %s859
          %s861 = sand.u32 %s113, 1
          %s862 = smul.addr %s861, 2
          %s863 = scalar_lea.vmem [#allocation11], %s862
          %864 = dma.done %s860, 32
        $region68: #{tpu_custom_call.1} parent=63 // pred_fallthru
          _
      $region64: #{tpu_custom_call.1} parent=5 // pred_fallthru
        _
    $region6: #{tpu_custom_call.1} parent=1 // loop_footer
      %s21 = sadd.s32 1, %s17
    $region7: #{tpu_custom_call.1} parent=1 // loop_footer_branch
      %16 = sbr.rel target = $region3
    $region8: #{tpu_custom_call.1} parent=1 // loop_exit
      _
    %865 = vsyncpa [#allocation5], 1
    %s866 = scalar_lea.sflag [#allocation5], 1
    %867 = vsyncpa %s866, 1
    %868 = vsyncpa [#allocation10], 1
    %s869 = scalar_lea.sflag [#allocation10], 1
    %870 = vsyncpa %s869, 1
    %871 = vsyncpa [#allocation6], 1
    %s872 = scalar_lea.sflag [#allocation6], 1
    %873 = vsyncpa %s872, 1
    %874 = vsyncpa [#allocation7], 1
    %s875 = scalar_lea.sflag [#allocation7], 1
    %876 = vsyncpa %s875, 1

</llo_original>
